<compile_context>
chip_gen: v6e
topology: v6e:2x2x1
jax: 0.10.0
libtpu: 0.0.40
codegen_flags: <defaults>
</compile_context>

<pallas_src>
import functools

import jax
import jax.numpy as jnp
from jax.experimental import pallas as pl
from jax.experimental.pallas import tpu as pltpu


def _vmem_capacity_bytes():
    """Per-core VMEM capacity; conservative 64 MiB (v7x) fallback."""
    try:
        return int(pltpu.get_tpu_info().vmem_capacity_bytes)
    except Exception:
        return 64 * 1024 * 1024


def _largest_divisor(n, cap, multiple=1):
    """Largest d with d | n, d <= cap, multiple | d (0 if none exists)."""
    best = 0
    for d in range(1, min(n, cap) + 1):
        if n % d == 0 and d % multiple == 0:
            best = d
    return best


def _round_up(x, m):
    return -(-x // m) * m


# --------------------------------------------------------------------------
# Lane-dense small-S kernels: pred/tgt (and pair mask) flattened to (B, S*S).
# --------------------------------------------------------------------------
def _flat_masked_kernel(pred_ref, tgt_ref, pair_ref, loss_ref, *, squared):
    """pred/tgt/pair: (BB, L); loss: (1, 1, BB)."""
    d = pred_ref[...].astype(jnp.float32) - tgt_ref[...].astype(jnp.float32)
    d = d * d if squared else jnp.abs(d)
    d = d * pair_ref[...]
    loss_ref[...] = jnp.sum(d, axis=1)[None, None, :]


def _flat_unmasked_kernel(pred_ref, tgt_ref, loss_ref, *, squared):
    """pred/tgt: (BB, L); loss: (1, 1, BB)."""
    d = pred_ref[...].astype(jnp.float32) - tgt_ref[...].astype(jnp.float32)
    d = d * d if squared else jnp.abs(d)
    loss_ref[...] = jnp.sum(d, axis=1)[None, None, :]


# --------------------------------------------------------------------------
# Row-tiled large-S kernels.
# --------------------------------------------------------------------------
def _tiled_masked_kernel(lens_ref, pred_ref, tgt_ref, mrow_ref, mcol_ref,
                         loss_ref, *, squared, ts, rpc, seq_len,
                         skip_by_len, mask_tail):
    """pred/tgt: (BB, TS, S); mrow: (BB, 1, S); mcol: (BB, TS, 1); loss: (1,1,BB)."""
    rr = pl.program_id(2)

    @pl.when(rr == 0)
    def _init():
        loss_ref[...] = jnp.zeros_like(loss_ref)

    r_glob = pl.program_id(1) * rpc + rr
    if skip_by_len:
        # bb == 1 here, so the batch-block index is the batch index.
        limit = lens_ref[pl.program_id(0)]
    else:
        limit = seq_len

    @pl.when(r_glob * ts < limit)
    def _compute():
        d = pred_ref[...].astype(jnp.float32) - tgt_ref[...].astype(jnp.float32)
        d = d * d if squared else jnp.abs(d)
        # Factored mask (exact for 0/1 masks):
        #   sum_ij m_i m_j d_ij = sum_i m_i * (sum_j m_j d_ij)
        d = d * mrow_ref[...]                              # lane-broadcast mult
        row = jnp.sum(d, axis=2, keepdims=True)            # (BB, TS, 1) lane reduce
        row = row * mcol_ref[...]
        if mask_tail:
            # Tail tile of a ceil-div row grid: zero rows past the real S
            # (OOB block contents are unspecified, so select — not multiply).
            ridx = jax.lax.broadcasted_iota(jnp.int32, row.shape, 1) + r_glob * ts
            row = jnp.where(ridx < seq_len, row, 0.0)
        loss_ref[...] += jnp.sum(row, axis=(1, 2))[None, None, :]


def _tiled_unmasked_kernel(pred_ref, tgt_ref, loss_ref, *, squared, ts, rpc,
                           seq_len, mask_tail):
    """pred/tgt: (BB, TS, S); loss: (1, 1, BB)."""
    rr = pl.program_id(2)

    @pl.when(rr == 0)
    def _init():
        loss_ref[...] = jnp.zeros_like(loss_ref)

    r_glob = pl.program_id(1) * rpc + rr

    @pl.when(r_glob * ts < seq_len)
    def _compute():
        d = pred_ref[...].astype(jnp.float32) - tgt_ref[...].astype(jnp.float32)
        d = d * d if squared else jnp.abs(d)
        row = jnp.sum(d, axis=2, keepdims=True)
        if mask_tail:
            ridx = jax.lax.broadcasted_iota(jnp.int32, row.shape, 1) + r_glob * ts
            row = jnp.where(ridx < seq_len, row, 0.0)
        loss_ref[...] += jnp.sum(row, axis=(1, 2))[None, None, :]


# --------------------------------------------------------------------------
# Wrappers
# --------------------------------------------------------------------------
def _flat_sums(pred, tgt, mask, target_block, usable, squared):
    """Lane-dense path for small S. Returns per-batch sums (B,) or None."""
    B, S, _ = pred.shape
    L = S * S
    itemsize = jnp.dtype(pred.dtype).itemsize
    cap_b = max(1, target_block // max(1, L * itemsize))
    if B <= cap_b:
        bb = B                                   # full batch dim -> layout OK
    else:
        bb = _largest_divisor(B, cap_b, multiple=8)
        if bb == 0:                              # no layout-friendly fold
            return None
    num_bb = B // bb

    pred2 = pred.reshape(B, L)                   # contiguous reshape: free
    tgt2 = tgt.reshape(B, L)

    data_spec = pl.BlockSpec((bb, L), lambda b: (b, 0))
    in_specs = [data_spec, data_spec]
    args = [pred2, tgt2]
    if mask is not None:
        mask_f = mask.astype(jnp.float32)
        pair = (mask_f[:, :, None] * mask_f[:, None, :]).reshape(B, L)
        in_specs.append(data_spec)
        args.append(pair)
        kernel = functools.partial(_flat_masked_kernel, squared=squared)
    else:
        kernel = functools.partial(_flat_unmasked_kernel, squared=squared)

    n_in = len(args)
    vmem_needed = n_in * 2 * bb * L * 4 + 2 * bb * L * 4 + (1 << 20)
    vmem_limit = min(usable, max(int(1.25 * vmem_needed), 16 << 20))

    sums = pl.pallas_call(
        kernel,
        out_shape=jax.ShapeDtypeStruct((num_bb, 1, bb), jnp.float32),
        grid_spec=pltpu.PrefetchScalarGridSpec(
            num_scalar_prefetch=0,
            grid=(num_bb,),
            in_specs=in_specs,
            out_specs=pl.BlockSpec((1, 1, bb), lambda b: (b, 0, 0)),
        ),
        compiler_params=pltpu.CompilerParams(
            dimension_semantics=("parallel",),
            vmem_limit_bytes=vmem_limit),
    )(*args)
    return sums.reshape(B)


def _tiled_sums(pred, tgt, mask, target_block, usable, squared):
    """Row-tiled streaming reduction. Returns per-batch sums (B,)."""
    B, S, _ = pred.shape
    itemsize = jnp.dtype(pred.dtype).itemsize
    sub_mult = {1: 32, 2: 16}.get(itemsize, 8)   # dtype-aware sublane packing

    full_mat_bytes = S * S * itemsize
    if full_mat_bytes <= target_block:
        # Fold several batch elements per block (amortise ~0.35us/step).
        bb = max(1, _largest_divisor(B, max(1, target_block // full_mat_bytes)))
        ts, num_rt = S, 1
    else:
        bb = 1
        ts = max(sub_mult, (target_block // (S * itemsize)) // sub_mult * sub_mult)
        ts = min(ts, _round_up(S, sub_mult))
        num_rt = -(-S // ts)                     # ceil-div row tiles (no ts=S fallback)
    num_bb = B // bb

    # Guarantee >=2-way parallel grid work for v7x's two TensorCores.
    ncores = 2 if (num_bb == 1 and num_rt >= 2) else 1
    rpc = -(-num_rt // ncores)

    mask_tail = (S % ts) != 0
    masked = mask is not None
    skip_by_len = masked and (bb == 1)

    block_bytes = bb * ts * S * itemsize
    f32_tmp = bb * ts * S * 4                    # upcast intermediate
    mask_bytes = (4 * bb * (S + ts) * 4) if masked else 0
    vmem_needed = 2 * 2 * block_bytes + 2 * f32_tmp + mask_bytes + (1 << 20)
    vmem_limit = min(usable, max(int(1.25 * vmem_needed), 16 << 20))

    out_shape = jax.ShapeDtypeStruct((num_bb * ncores, 1, bb), jnp.float32)

    if masked:
        mask_f = mask.astype(jnp.float32)
        mrow = mask_f[:, None, :]                # (B, 1, S)
        mcol = mask_f[:, :, None]                # (B, S, 1)
        lengths = jnp.sum(mask_f, axis=1).astype(jnp.int32)   # (B,) -> SMEM

        def data_map(b, c, rr, lens):
            r = c * rpc + rr
            if skip_by_len:
                # Clamp to the last tile that holds valid tokens: further grid
                # steps return the same block index, so Pallas skips the DMA.
                last = jnp.maximum((lens[b] + ts - 1) // ts - 1, 0)
                r = jnp.minimum(r, last)
            return (b, jnp.minimum(r, num_rt - 1), 0)

        def mrow_map(b, c, rr, lens):
            return (b, 0, 0)

        def out_map(b, c, rr, lens):
            return (b * ncores + c, 0, 0)

        kernel = functools.partial(
            _tiled_masked_kernel, squared=squared, ts=ts, rpc=rpc,
            seq_len=S, skip_by_len=skip_by_len, mask_tail=mask_tail)

        grid_spec = pltpu.PrefetchScalarGridSpec(
            num_scalar_prefetch=1,
            grid=(num_bb, ncores, rpc),
            in_specs=[
                pl.BlockSpec((bb, ts, S), data_map),
                pl.BlockSpec((bb, ts, S), data_map),
                pl.BlockSpec((bb, 1, S), mrow_map),
                pl.BlockSpec((bb, ts, 1), data_map),
            ],
            out_specs=pl.BlockSpec((1, 1, bb), out_map),
        )
        args = (lengths, pred, tgt, mrow, mcol)
    else:
        def data_map(b, c, rr):
            return (b, jnp.minimum(c * rpc + rr, num_rt - 1), 0)

        def out_map(b, c, rr):
            return (b * ncores + c, 0, 0)

        kernel = functools.partial(
            _tiled_unmasked_kernel, squared=squared, ts=ts, rpc=rpc,
            seq_len=S, mask_tail=mask_tail)

        grid_spec = pltpu.PrefetchScalarGridSpec(
            num_scalar_prefetch=0,
            grid=(num_bb, ncores, rpc),
            in_specs=[
                pl.BlockSpec((bb, ts, S), data_map),
                pl.BlockSpec((bb, ts, S), data_map),
            ],
            out_specs=pl.BlockSpec((1, 1, bb), out_map),
        )
        args = (pred, tgt)

    sums = pl.pallas_call(
        kernel,
        out_shape=out_shape,
        grid_spec=grid_spec,
        compiler_params=pltpu.CompilerParams(
            dimension_semantics=("parallel", "parallel", "arbitrary"),
            vmem_limit_bytes=vmem_limit),
    )(*args)
    # Combine the parallel row-tile halves, restore batch order.
    return sums.reshape(num_bb, ncores, bb).sum(axis=1).reshape(B)


def hyperbolic_distance_loss(predicted_distances, target_distances,
                             attention_mask=None, *, normalize=True,
                             squared=False, _target_block_bytes=None):
    B, S, S2 = predicted_distances.shape
    assert S == S2
    masked = attention_mask is not None

    vmem_cap = _vmem_capacity_bytes()
    usable = int(0.80 * vmem_cap)                # headroom for compiler scratch
    if _target_block_bytes is not None:
        target_block = _target_block_bytes       # test/tuning override
    else:
        target_block = min(8 << 20, max(1 << 20, usable // 12))

    lane_dense_max_s = 64 if masked else 128
    sums = None
    if S < lane_dense_max_s:
        sums = _flat_sums(predicted_distances, target_distances,
                          attention_mask, target_block, usable, squared)
    if sums is None:
        sums = _tiled_sums(predicted_distances, target_distances,
                           attention_mask, target_block, usable, squared)

    if normalize:
        if masked:
            # Exact for 0/1 masks: sum_ij m_i m_j == (sum_i m_i)^2.  Non-negative
            # mask is also what makes |m_i m_j (p-t)| == m_i m_j |p-t| (as in torch).
            counts = jnp.sum(attention_mask.astype(jnp.float32), axis=1) ** 2
        else:
            counts = jnp.full((B,), float(S * S), jnp.float32)
        sums = sums / jnp.maximum(counts, 1.0)
    return jnp.mean(sums)


def _reference_loss(pred, tgt, mask=None, *, normalize=True, squared=False):
    """Pure-JAX mirror of the torch forward for correctness checking."""
    pred = pred.astype(jnp.float32)
    tgt = tgt.astype(jnp.float32)
    if mask is not None:
        pair = (mask[:, :, None].astype(jnp.float32)
                * mask[:, None, :].astype(jnp.float32))
        pred = pred * pair
        tgt = tgt * pair
    else:
        pair = jnp.ones_like(pred)
    d = (pred - tgt) ** 2 if squared else jnp.abs(pred - tgt)
    sent = jnp.sum(d, axis=(1, 2))
    if normalize:
        valid = jnp.maximum(jnp.sum(pair, axis=(1, 2)), 1.0)
        sent = sent / valid
    return jnp.mean(sent)


if __name__ == "__main__":
    key = jax.random.PRNGKey(0)
    k1, k2, k3, k4 = jax.random.split(key, 4)

    # ---- small-S (lane-dense path), matches the module's typical probe shapes
    B, S = 2, 8
    predicted = jnp.abs(jax.random.normal(k1, (B, S, S), jnp.float32))
    target = jnp.abs(jax.random.normal(k2, (B, S, S), jnp.float32))
    lengths = jnp.array([6, 8], jnp.int32)
    attention_mask = (jnp.arange(S)[None, :] < lengths[:, None]).astype(jnp.float32)

    loss = jax.block_until_ready(
        hyperbolic_distance_loss(predicted, target, attention_mask))
    ref = _reference_loss(predicted, target, attention_mask)
    assert jnp.allclose(loss, ref, rtol=1e-5, atol=1e-5), (loss, ref)

    loss_sq = jax.block_until_ready(
        hyperbolic_distance_loss(predicted, target, attention_mask, squared=True))
    ref_sq = _reference_loss(predicted, target, attention_mask, squared=True)
    assert jnp.allclose(loss_sq, ref_sq, rtol=1e-5, atol=1e-5), (loss_sq, ref_sq)

    loss_nm = jax.block_until_ready(
        hyperbolic_distance_loss(predicted, target, None))
    ref_nm = _reference_loss(predicted, target, None)
    assert jnp.allclose(loss_nm, ref_nm, rtol=1e-5, atol=1e-5), (loss_nm, ref_nm)

    pred_bf = predicted.astype(jnp.bfloat16)
    tgt_bf = target.astype(jnp.bfloat16)
    loss_bf = jax.block_until_ready(
        hyperbolic_distance_loss(pred_bf, tgt_bf, attention_mask))
    ref_bf = _reference_loss(pred_bf.astype(jnp.float32),
                             tgt_bf.astype(jnp.float32), attention_mask)
    assert jnp.allclose(loss_bf, ref_bf, rtol=1e-5, atol=1e-5), (loss_bf, ref_bf)

    # ---- row-tiled masked path (forced small target block): exercises ceil-div
    # row tiles, the tail-row iota mask, length-based tile skipping and the
    # 2-way parallel row split (num_bb == 1 -> ncores = 2).
    Bm, Sm = 1, 70
    pm = jnp.abs(jax.random.normal(k3, (Bm, Sm, Sm), jnp.float32))
    tm = jnp.abs(jax.random.normal(k4, (Bm, Sm, Sm), jnp.float32))
    mlen = jnp.array([50], jnp.int32)
    m_tiled = (jnp.arange(Sm)[None, :] < mlen[:, None]).astype(jnp.float32)
    loss_t = jax.block_until_ready(
        hyperbolic_distance_loss(pm, tm, m_tiled, _target_block_bytes=16 * 1024))
    ref_t = _reference_loss(pm, tm, m_tiled)
    assert jnp.allclose(loss_t, ref_t, rtol=1e-5, atol=1e-5), (loss_t, ref_t)

    # ---- row-tiled unmasked path, odd tile count + 2-core split with overhang.
    Bu, Su = 1, 150
    pu = jnp.abs(jax.random.normal(k3, (Bu, Su, Su), jnp.float32))
    tu = jnp.abs(jax.random.normal(k4, (Bu, Su, Su), jnp.float32))
    loss_u = jax.block_until_ready(
        hyperbolic_distance_loss(pu, tu, None, _target_block_bytes=16 * 1024))
    ref_u = _reference_loss(pu, tu, None)
    assert jnp.allclose(loss_u, ref_u, rtol=1e-5, atol=1e-5), (loss_u, ref_u)

    # ---- row-tiled unmasked, multiple batch blocks (ncores = 1).
    Bu2, Su2 = 2, 150
    pu2 = jnp.abs(jax.random.normal(k1, (Bu2, Su2, Su2), jnp.float32))
    tu2 = jnp.abs(jax.random.normal(k2, (Bu2, Su2, Su2), jnp.float32))
    loss_u2 = jax.block_until_ready(
        hyperbolic_distance_loss(pu2, tu2, None, _target_block_bytes=16 * 1024))
    ref_u2 = _reference_loss(pu2, tu2, None)
    assert jnp.allclose(loss_u2, ref_u2, rtol=1e-5, atol=1e-5), (loss_u2, ref_u2)

    print("KERNEL_OK")
</pallas_src>

<mosaic_0001>
module attributes {stable_mosaic.version = 11 : i64} {
  func.func @_flat_masked_kernel(%arg0: i32, %arg1: memref<2x64xf32, #tpu.memory_space<vmem>>, %arg2: memref<2x64xf32, #tpu.memory_space<vmem>>, %arg3: memref<2x64xf32, #tpu.memory_space<vmem>>, %arg4: memref<1x1x2xf32, #tpu.memory_space<vmem>>) attributes {dimension_semantics = [#tpu.dimension_semantics<parallel>], iteration_bounds = array<i64: 1>, scalar_prefetch = 0 : i64, scratch_operands = 0 : i64, tpu.core_type = #tpu.core_type<tc>, window_params = [{transform_indices = @transform_0, window_bounds = array<i64: 2, 64>}, {transform_indices = @transform_1, window_bounds = array<i64: 2, 64>}, {transform_indices = @transform_2, window_bounds = array<i64: 2, 64>}, {transform_indices = @transform_3, window_bounds = array<i64: 1, 1, 2>}]} {
    %c0 = arith.constant 0 : index
    %c0_0 = arith.constant 0 : index
    %0 = vector.load %arg1[%c0, %c0_0] : memref<2x64xf32, #tpu.memory_space<vmem>>, vector<2x64xf32>
    %c0_1 = arith.constant 0 : index
    %c0_2 = arith.constant 0 : index
    %1 = vector.load %arg2[%c0_1, %c0_2] : memref<2x64xf32, #tpu.memory_space<vmem>>, vector<2x64xf32>
    %2 = arith.subf %0, %1 : vector<2x64xf32>
    %3 = math.absf %2 : vector<2x64xf32>
    %c0_3 = arith.constant 0 : index
    %c0_4 = arith.constant 0 : index
    %4 = vector.load %arg3[%c0_3, %c0_4] : memref<2x64xf32, #tpu.memory_space<vmem>>, vector<2x64xf32>
    %5 = arith.mulf %3, %4 : vector<2x64xf32>
    %cst = arith.constant dense<0.000000e+00> : vector<2xf32>
    %6 = vector.multi_reduction <add>, %5, %cst [1] : vector<2x64xf32> to vector<2xf32>
    %7 = vector.shape_cast %6 : vector<2xf32> to vector<1x1x2xf32>
    %c0_5 = arith.constant 0 : index
    %c0_6 = arith.constant 0 : index
    %c0_7 = arith.constant 0 : index
    %8 = vector.load %arg4[%c0_5, %c0_6, %c0_7] : memref<1x1x2xf32, #tpu.memory_space<vmem>>, vector<1x1x2xf32>
    tpu.vector_store %arg4[%c0_5, %c0_6, %c0_7], %7 {strides = array<i32>} : memref<1x1x2xf32, #tpu.memory_space<vmem>>, vector<1x1x2xf32>,
    return
  }
  func.func @transform_0(%arg0: i32) -> (i32, i32) {
    %c0_i32 = arith.constant 0 : i32
    %c0_i32_0 = arith.constant 0 : i32
    return %arg0, %c0_i32 : i32, i32
  }
  func.func @transform_1(%arg0: i32) -> (i32, i32) {
    %c0_i32 = arith.constant 0 : i32
    %c0_i32_0 = arith.constant 0 : i32
    return %arg0, %c0_i32 : i32, i32
  }
  func.func @transform_2(%arg0: i32) -> (i32, i32) {
    %c0_i32 = arith.constant 0 : i32
    %c0_i32_0 = arith.constant 0 : i32
    return %arg0, %c0_i32 : i32, i32
  }
  func.func @transform_3(%arg0: i32) -> (i32, i32, i32) {
    %c0_i32 = arith.constant 0 : i32
    %c0_i32_0 = arith.constant 0 : i32
    %c0_i32_1 = arith.constant 0 : i32
    return %arg0, %c0_i32, %c0_i32_0 : i32, i32, i32
  }
}

</mosaic_0001>

<llo_original>
// kernel: tpu_custom_call.1
$region0: #{tpu_custom_call.1}
  #allocation0 [shape = 'u32[]', space=smem, size = 0x4, offset = 0x4, fixed_abs, tag = 'smem constant byte address 0x4 - core index']
  #allocation1 [shape = 'u32[144,128]{1,0:T(1,128)}', space=vmem, size = 0x12000, scoped, tag = 'internal scratch']
  %s0 = inlined_call_operand.hbm [shape: f32[2,64], index: 0, kind: input, shape index: {}]
  %s1 = inlined_call_operand.hbm [shape: f32[2,64], index: 1, kind: input, shape index: {}]
  %s2 = inlined_call_operand.vmem [shape: f32[2,64], index: 2, kind: input, shape index: {}]
  %s3 = inlined_call_operand.hbm [shape: f32[1,1,2], index: 3, kind: output, shape index: {}]
  %s4 = sld [smem:[#allocation0]]
  $region30: #{tpu_custom_call.1} parent=0
    _
  %s6 = ssub.s32 1, %s4
  %s7 = scalar_select 0, %s6, %s4
  $region1: #{tpu_custom_call.1} parent=0
    #allocation2 [shape = 'u8[1024]{0}', space=vmem, size = 0x400, scoped, tag = 'input window, operand 0, single buffered']
    #allocation3 [shape = 's32[1]{0}', space=sflag, size = 0x4, scoped, tag = 'scoped memory for tpu_custom_call.1']
    #allocation4 [shape = 's32[1]{0}', space=sflag, size = 0x4, scoped, tag = 'scoped memory for tpu_custom_call.1']
    #allocation5 [shape = 'u8[1024]{0}', space=vmem, size = 0x400, scoped, tag = 'input window, operand 1, single buffered']
    #allocation6 [shape = 's32[1]{0}', space=sflag, size = 0x4, scoped, tag = 'scoped memory for tpu_custom_call.1']
    #allocation7 [shape = 'u8[512]{0}', space=vmem, size = 0x400, scoped, tag = 'output window, operand 0, single buffered']
    %8 = vsyncpa [#allocation3], 0
    %9 = vsyncpa [#allocation6], 0
    %10 = vsyncpa [#allocation4], 0
    // Predicated region
    $region2: #{tpu_custom_call.1} parent=1 // pred_check
      _
    $region3: #{tpu_custom_call.1} parent=1 // pred_check_branch
      %12 = sbr.rel (0) target = $region5
    $region4: #{tpu_custom_call.1} parent=1 // pred_region
      %s14 = ssub.s32 32, 32
      %15 = vsyncadd [#allocation3], %s14
      %s17 = sshll.u32 [#allocation2], 4
      %s18 = int_to_ptr.vmem [resolvable:$true] %s17
      %20 = dma.hbm_to_vmem [thread:$0]  %s0, 32, %s18, [#allocation3]
    $region5: #{tpu_custom_call.1} parent=1 // pred_fallthru
      _
    // Predicated region
    $region6: #{tpu_custom_call.1} parent=1 // pred_check
      _
    $region7: #{tpu_custom_call.1} parent=1 // pred_check_branch
      %22 = sbr.rel (0) target = $region9
    $region8: #{tpu_custom_call.1} parent=1 // pred_region
      %s24 = ssub.s32 32, 32
      %25 = vsyncadd [#allocation6], %s24
      %s27 = sshll.u32 [#allocation5], 4
      %s28 = int_to_ptr.vmem [resolvable:$true] %s27
      %30 = dma.hbm_to_vmem [thread:$0]  %s1, 32, %s28, [#allocation6]
    $region9: #{tpu_custom_call.1} parent=1 // pred_fallthru
      _
    // Predicated region
    $region10: #{tpu_custom_call.1} parent=1 // pred_check
      _
    $region11: #{tpu_custom_call.1} parent=1 // pred_check_branch
      %32 = sbr.rel (0) target = $region13
    $region12: #{tpu_custom_call.1} parent=1 // pred_region
      _
    $region13: #{tpu_custom_call.1} parent=1 // pred_fallthru
      _
    // Predicated region
    $region14: #{tpu_custom_call.1} parent=1 // pred_check
      _
    $region15: #{tpu_custom_call.1} parent=1 // pred_check_branch
      %34 = sbr.rel (0) target = $region17
    $region16: #{tpu_custom_call.1} parent=1 // pred_region
      %35 = dma.done [#allocation3], 32
    $region17: #{tpu_custom_call.1} parent=1 // pred_fallthru
      _
    // Predicated region
    $region18: #{tpu_custom_call.1} parent=1 // pred_check
      _
    $region19: #{tpu_custom_call.1} parent=1 // pred_check_branch
      %37 = sbr.rel (0) target = $region21
    $region20: #{tpu_custom_call.1} parent=1 // pred_region
      %38 = dma.done [#allocation6], 32
    $region21: #{tpu_custom_call.1} parent=1 // pred_fallthru
      _
    %v39 = vld [vmem:[#allocation2] sm:$0x3]
    %v40 = vld [vmem:[#allocation5] sm:$0x3]
    %v41 = vsub.f32 %v39, %v40
    %v42 = vand.u32 2147483647, %v41
    %v43 = vld [vmem:[%s2] sm:$0x3]
    %v44 = vmul.f32 %v42, %v43
    %vm45 = vcmask 517120
    %v46 = vsel %vm45, %v44, 0.0
    %47 = vadd.xlane.f32.xlu0 %v46
    %v48 = vpop.xlane.xlu0 %47
    %v50 = vlaneseq
    %v51 = vand.u32 %v50, 127
    %v52 = vlaneseq
    %v53 = vshrl.u32 %v52, 7
    %v54 = vsub.s32 %v51, %v53
    %v55 = vrot.slane %v48, %v54
    %vm57 = vcmask 8192
    %58 = vst.msk [vmem:[#allocation7] sm:$0x1] %vm57, %v55
    // Predicated region
    $region22: #{tpu_custom_call.1} parent=1 // pred_check
      _
    $region23: #{tpu_custom_call.1} parent=1 // pred_check_branch
      %60 = sbr.rel (0) target = $region25
    $region24: #{tpu_custom_call.1} parent=1 // pred_region
      %s62 = ssub.s32 16, 16
      %63 = vsyncadd [#allocation4], %s62
      %s65 = sshll.u32 [#allocation7], 4
      %s66 = int_to_ptr.vmem [resolvable:$true] %s65
      %68 = dma.vmem_to_hbm [thread:$0]  %s66, 16, %s3, [#allocation4]
    $region25: #{tpu_custom_call.1} parent=1 // pred_fallthru
      _
    // Predicated region
    $region26: #{tpu_custom_call.1} parent=1 // pred_check
      _
    $region27: #{tpu_custom_call.1} parent=1 // pred_check_branch
      %70 = sbr.rel (0) target = $region29
    $region28: #{tpu_custom_call.1} parent=1 // pred_region
      %71 = dma.done [#allocation4], 16
    $region29: #{tpu_custom_call.1} parent=1 // pred_fallthru
      _
    %72 = vsyncpa [#allocation3], 1
    %73 = vsyncpa [#allocation6], 1
    %74 = vsyncpa [#allocation4], 1

</llo_original>
